<compile_context>
chip_gen: v7x
topology: tpu7x:2x2x1
jax: 0.10.0
libtpu: 0.0.40
codegen_flags: <defaults>
</compile_context>

<pallas_src>
import jax
import jax.numpy as jnp
from jax.experimental import pallas as pl
from jax.experimental.pallas import tpu as pltpu


def _dict_model_kernel(xa_ref, y_ref, w_ref, b_ref, o_ref):
    # xa_ref: (n, 10)  -- x['a'] flattened
    # y_ref : (n, 10)  -- y flattened
    # w_ref : (10, 5)  -- linear weight stored (in, out)
    # b_ref : (1, 5)   -- bias, broadcasts over rows
    # o_ref : (n, 15)  -- lane-packed [out1 | out2 | out3]
    w = w_ref[...]
    b = b_ref[...]
    out1 = jnp.dot(xa_ref[...], w, preferred_element_type=jnp.float32) + b  # (n, 5)
    out2 = jnp.dot(y_ref[...], w, preferred_element_type=jnp.float32) + b   # (n, 5)
    out3 = out1 + out2                                                      # VPU add, free
    # Single lane-wise pack: (n, 15) fits one vreg -> one masked store.
    o_ref[...] = jnp.concatenate([out1, out2, out3], axis=1)


def dict_input_dict_output_forward(y, x, z, w, params):
    """Mirror of DictInputDictOutputModel.forward(y, x, z, w).

    y: (3, 1, 5, 2) float32
    x: {'a': (3, 5, 2) float32}
    z, w: unused (kept for signature parity with the PyTorch module)
    params: (weight_T (10, 5), bias (5,))
    """
    del z, w  # unused in the PyTorch forward as well
    weight_t, bias = params

    xa_flat = x["a"].reshape(-1, 10)   # (n, 10)
    y_flat = y.reshape(-1, 10)         # (n, 10)
    n = xa_flat.shape[0]
    b2d = bias.reshape(1, 5)           # (1, 5)

    vmem = pl.BlockSpec(memory_space=pltpu.MemorySpace.VMEM)

    packed = pl.pallas_call(
        _dict_model_kernel,
        out_shape=jax.ShapeDtypeStruct((n, 15), jnp.float32),
        in_specs=[vmem, vmem, vmem, vmem],
        out_specs=vmem,
    )(xa_flat, y_flat, weight_t, b2d)

    out1 = packed[:, 0:5]
    out2 = packed[:, 5:10]
    out3 = packed[:, 10:15]
    return {1: out1, 2: out2, 3: [out1, out3]}


def init_params(key):
    """Deterministic init matching nn.Linear(10, 5) shapes."""
    k_w, k_b = jax.random.split(key)
    bound = 1.0 / jnp.sqrt(10.0)
    weight = jax.random.uniform(k_w, (5, 10), jnp.float32, -bound, bound)  # (out, in)
    bias = jax.random.uniform(k_b, (5,), jnp.float32, -bound, bound)
    return weight.T, bias  # store transposed (in, out) for the kernel layout


if __name__ == "__main__":
    key = jax.random.PRNGKey(0)
    k_params, k_xa, k_y = jax.random.split(key, 3)

    params = init_params(k_params)

    # Inputs with the shapes implied by the module's input_array.
    x = {"a": jax.random.uniform(k_xa, (3, 5, 2), jnp.float32)}
    y = jax.random.uniform(k_y, (3, 1, 5, 2), jnp.float32)
    z = jnp.array(2, dtype=jnp.int32)
    w = 42

    out = dict_input_dict_output_forward(y, x, z, w, params)
    jax.block_until_ready(out)

    # Light sanity check against plain JAX reference.
    weight_t, bias = params
    ref1 = x["a"].reshape(-1, 10) @ weight_t + bias
    ref2 = y.reshape(-1, 10) @ weight_t + bias
    assert jnp.allclose(out[1], ref1, atol=1e-5)
    assert jnp.allclose(out[2], ref2, atol=1e-5)
    assert jnp.allclose(out[3][0], ref1, atol=1e-5)
    assert jnp.allclose(out[3][1], ref1 + ref2, atol=1e-5)

    print("KERNEL_OK")
</pallas_src>

<mosaic_0001>
module attributes {stable_mosaic.version = 11 : i64} {
  func.func @_dict_model_kernel(%arg0: memref<3x10xf32, #tpu.memory_space<vmem>>, %arg1: memref<3x10xf32, #tpu.memory_space<vmem>>, %arg2: memref<10x5xf32, #tpu.memory_space<vmem>>, %arg3: memref<1x5xf32, #tpu.memory_space<vmem>>, %arg4: memref<3x15xf32, #tpu.memory_space<vmem>>) attributes {dimension_semantics = [], scalar_prefetch = 0 : i64, scratch_operands = 0 : i64, tpu.core_type = #tpu.core_type<tc>} {
    %c0 = arith.constant 0 : index
    %c0_0 = arith.constant 0 : index
    %0 = vector.load %arg2[%c0, %c0_0] : memref<10x5xf32, #tpu.memory_space<vmem>>, vector<10x5xf32>
    %c0_1 = arith.constant 0 : index
    %c0_2 = arith.constant 0 : index
    %1 = vector.load %arg3[%c0_1, %c0_2] : memref<1x5xf32, #tpu.memory_space<vmem>>, vector<1x5xf32>
    %c0_3 = arith.constant 0 : index
    %c0_4 = arith.constant 0 : index
    %2 = vector.load %arg0[%c0_3, %c0_4] : memref<3x10xf32, #tpu.memory_space<vmem>>, vector<3x10xf32>
    %cst = arith.constant dense<0.000000e+00> : vector<3x5xf32>
    %3 = tpu.matmul %2, %0, %cst {dimension_numbers = #tpu.dot_dimension_numbers<[1], [0], [0], [1], [0, 0, 1, 1], [], []>} : vector<3x10xf32>, vector<10x5xf32>, vector<3x5xf32> -> vector<3x5xf32>
    %4 = vector.broadcast %1 : vector<1x5xf32> to vector<3x5xf32>
    %5 = arith.addf %3, %4 : vector<3x5xf32>
    %c0_5 = arith.constant 0 : index
    %c0_6 = arith.constant 0 : index
    %6 = vector.load %arg1[%c0_5, %c0_6] : memref<3x10xf32, #tpu.memory_space<vmem>>, vector<3x10xf32>
    %cst_7 = arith.constant dense<0.000000e+00> : vector<3x5xf32>
    %7 = tpu.matmul %6, %0, %cst_7 {dimension_numbers = #tpu.dot_dimension_numbers<[1], [0], [0], [1], [0, 0, 1, 1], [], []>} : vector<3x10xf32>, vector<10x5xf32>, vector<3x5xf32> -> vector<3x5xf32>
    %8 = vector.broadcast %1 : vector<1x5xf32> to vector<3x5xf32>
    %9 = arith.addf %7, %8 : vector<3x5xf32>
    %10 = arith.addf %5, %9 : vector<3x5xf32>
    %11 = tpu.concatenate %5, %9, %10 in 1 : vector<3x5xf32>, vector<3x5xf32>, vector<3x5xf32> -> vector<3x15xf32>
    %c0_8 = arith.constant 0 : index
    %c0_9 = arith.constant 0 : index
    %12 = vector.load %arg4[%c0_8, %c0_9] : memref<3x15xf32, #tpu.memory_space<vmem>>, vector<3x15xf32>
    tpu.vector_store %arg4[%c0_8, %c0_9], %11 {strides = array<i32>} : memref<3x15xf32, #tpu.memory_space<vmem>>, vector<3x15xf32>,
    return
  }
}

</mosaic_0001>

<llo_original>
// kernel: tpu_custom_call.1
$region0: #{tpu_custom_call.1}
  #allocation0 [shape = 'u32[]', space=smem, size = 0x4, offset = 0x4, fixed_abs, tag = 'smem constant byte address 0x4 - core index']
  #allocation1 [shape = 'u32[144,128]{1,0:T(1,128)}', space=vmem, size = 0x12000, scoped, tag = 'internal scratch']
  %s0 = inlined_call_operand.vmem [shape: f32[3,10], index: 0, kind: input, shape index: {}]
  %s1 = inlined_call_operand.vmem [shape: f32[3,10], index: 1, kind: input, shape index: {}]
  %s2 = inlined_call_operand.vmem [shape: f32[10,5], index: 2, kind: input, shape index: {}]
  %s3 = inlined_call_operand.vmem [shape: f32[1,5], index: 3, kind: input, shape index: {}]
  %s4 = inlined_call_operand.hbm [shape: f32[3,15], index: 4, kind: output, shape index: {}]
  %s5 = sld [smem:[#allocation0]]
  $region26: #{tpu_custom_call.1} parent=0
    _
  %s7 = ssub.s32 1, %s5
  %s8 = scalar_select 0, %s7, %s5
  $region1: #{tpu_custom_call.1} parent=0
    #allocation2 [shape = 'u8[2048]{0}', space=vmem, size = 0x800, scoped, tag = 'output window, operand 0, single buffered']
    #allocation3 [shape = 's32[1]{0}', space=sflag, size = 0x4, scoped, tag = 'scoped memory for tpu_custom_call.1']
    %9 = vsyncpa [#allocation3], 0
    // Predicated region
    $region2: #{tpu_custom_call.1} parent=1 // pred_check
      _
    $region3: #{tpu_custom_call.1} parent=1 // pred_check_branch
      %11 = sbr.rel (0) target = $region5
    $region4: #{tpu_custom_call.1} parent=1 // pred_region
      _
    $region5: #{tpu_custom_call.1} parent=1 // pred_fallthru
      _
    // Predicated region
    $region6: #{tpu_custom_call.1} parent=1 // pred_check
      _
    $region7: #{tpu_custom_call.1} parent=1 // pred_check_branch
      %13 = sbr.rel (0) target = $region9
    $region8: #{tpu_custom_call.1} parent=1 // pred_region
      _
    $region9: #{tpu_custom_call.1} parent=1 // pred_fallthru
      _
    // Predicated region
    $region10: #{tpu_custom_call.1} parent=1 // pred_check
      _
    $region11: #{tpu_custom_call.1} parent=1 // pred_check_branch
      %15 = sbr.rel (0) target = $region13
    $region12: #{tpu_custom_call.1} parent=1 // pred_region
      _
    $region13: #{tpu_custom_call.1} parent=1 // pred_fallthru
      _
    // Predicated region
    $region14: #{tpu_custom_call.1} parent=1 // pred_check
      _
    $region15: #{tpu_custom_call.1} parent=1 // pred_check_branch
      %17 = sbr.rel (0) target = $region17
    $region16: #{tpu_custom_call.1} parent=1 // pred_region
      _
    $region17: #{tpu_custom_call.1} parent=1 // pred_fallthru
      _
    %v18 = vld [vmem:[%s2] sm:$0xff]
    %v19 = vld [vmem:[%s2 + $0x8] sm:$0x3]
    %v20 = vld [vmem:[%s3] sm:$0x1]
    %v21 = vld [vmem:[%s0] sm:$0x7]
    %v23 = vlaneseq
    %v24 = vshrl.u32 %v23, 7
    %v25 = vsub.s32 0, %v24
    %v26 = vrot.slane %v20, %v25
    %vm28 = vcmask 80896
    %v30 = vsel %vm28, %v21, 0
    %vm32 = vcmask 1041408
    %v34 = vsel %vm32, %v19, 0
    %36 = vmatprep.subr.mxu0 0.0
    %37 = vmatpush1.msra.mxu0 %v18
    %38 = vmatprep.subr.mxu0 0.0
    %39 = vmatpush1.msra.mxu0 %v34
    %40 = vmatprep.subr.mxu0 0.0
    %41 = vmatpush1.msra.mxu0 0.0
    %42 = vmatprep.subr.mxu0 0.0
    %43 = vmatpush1.msra.mxu0 0.0
    %44 = vmatprep.subr.mxu0 0.0
    %45 = vmatpush1.msra.mxu0 0.0
    %46 = vmatprep.subr.mxu0 0.0
    %47 = vmatpush1.msra.mxu0 0.0
    %48 = vmatprep.subr.mxu0 0.0
    %49 = vmatpush1.msra.mxu0 0.0
    %50 = vmatprep.subr.mxu0 0.0
    %51 = vmatpush1.msra.mxu0 0.0
    %52 = vmatprep.subr.mxu0 0.0
    %53 = vmatpush1.msra.mxu0 0.0
    %54 = vmatprep.subr.mxu0 0.0
    %55 = vmatpush1.msra.mxu0 0.0
    %56 = vmatprep.subr.mxu0 0.0
    %57 = vmatpush1.msra.mxu0 0.0
    %58 = vmatprep.subr.mxu0 0.0
    %59 = vmatpush1.msra.mxu0 0.0
    %60 = vmatprep.subr.mxu0 0.0
    %61 = vmatpush1.msra.mxu0 0.0
    %62 = vmatprep.subr.mxu0 0.0
    %63 = vmatpush1.msra.mxu0 0.0
    %64 = vmatprep.subr.mxu0 0.0
    %65 = vmatpush1.msra.mxu0 0.0
    %66 = vmatprep.subr.mxu0 0.0
    %67 = vmatpush1.msra.mxu0 0.0
    %68 = vmatprep.subr.mxu0 0.0
    %69 = vmatpush1.msra.mxu0 0.0
    %70 = vmatprep.subr.mxu0 0.0
    %71 = vmatpush1.msra.mxu0 0.0
    %72 = vmatprep.subr.mxu0 0.0
    %73 = vmatpush1.msra.mxu0 0.0
    %74 = vmatprep.subr.mxu0 0.0
    %75 = vmatpush1.msra.mxu0 0.0
    %76 = vmatprep.subr.mxu0 0.0
    %77 = vmatpush1.msra.mxu0 0.0
    %78 = vmatprep.subr.mxu0 0.0
    %79 = vmatpush1.msra.mxu0 0.0
    %80 = vmatprep.subr.mxu0 0.0
    %81 = vmatpush1.msra.mxu0 0.0
    %82 = vmatprep.subr.mxu0 0.0
    %83 = vmatpush1.msra.mxu0 0.0
    %84 = vmatprep.subr.mxu0 0.0
    %85 = vmatpush1.msra.mxu0 0.0
    %86 = vmatprep.subr.mxu0 0.0
    %87 = vmatpush1.msra.mxu0 0.0
    %88 = vmatprep.subr.mxu0 0.0
    %89 = vmatpush1.msra.mxu0 0.0
    %90 = vmatprep.subr.mxu0 0.0
    %91 = vmatpush1.msra.mxu0 0.0
    %92 = vmatprep.subr.mxu0 0.0
    %93 = vmatpush1.msra.mxu0 0.0
    %94 = vmatprep.subr.mxu0 0.0
    %95 = vmatpush1.msra.mxu0 0.0
    %96 = vmatprep.subr.mxu0 0.0
    %97 = vmatpush1.msra.mxu0 0.0
    %98 = vmatprep.subr.mxu0 0.0
    %99 = vmatpush1.msra.mxu0 0.0
    %100 = vmatprep.mubr.f32.mxu0 0.0
    %101 = vmatmul.mubr.f32.gmra.mrb[0].mxu0 %v30
    %v102 = vpop.f32.mrb[0].mxu0
    %v103 = vadd.f32 %v26, %v102
    %v104 = vpop.f32.mrb[0].mxu0
    %105 = vdwg.mxu0
    %v106 = vld [vmem:[%s1] sm:$0x7]
    %v108 = vsel %vm28, %v106, 0
    %110 = vmatprep.subr.mxu0 0.0
    %111 = vmatpush1.msra.mxu0 %v18
    %112 = vmatprep.subr.mxu0 0.0
    %113 = vmatpush1.msra.mxu0 %v34
    %114 = vmatprep.subr.mxu0 0.0
    %115 = vmatpush1.msra.mxu0 0.0
    %116 = vmatprep.subr.mxu0 0.0
    %117 = vmatpush1.msra.mxu0 0.0
    %118 = vmatprep.subr.mxu0 0.0
    %119 = vmatpush1.msra.mxu0 0.0
    %120 = vmatprep.subr.mxu0 0.0
    %121 = vmatpush1.msra.mxu0 0.0
    %122 = vmatprep.subr.mxu0 0.0
    %123 = vmatpush1.msra.mxu0 0.0
    %124 = vmatprep.subr.mxu0 0.0
    %125 = vmatpush1.msra.mxu0 0.0
    %126 = vmatprep.subr.mxu0 0.0
    %127 = vmatpush1.msra.mxu0 0.0
    %128 = vmatprep.subr.mxu0 0.0
    %129 = vmatpush1.msra.mxu0 0.0
    %130 = vmatprep.subr.mxu0 0.0
    %131 = vmatpush1.msra.mxu0 0.0
    %132 = vmatprep.subr.mxu0 0.0
    %133 = vmatpush1.msra.mxu0 0.0
    %134 = vmatprep.subr.mxu0 0.0
    %135 = vmatpush1.msra.mxu0 0.0
    %136 = vmatprep.subr.mxu0 0.0
    %137 = vmatpush1.msra.mxu0 0.0
    %138 = vmatprep.subr.mxu0 0.0
    %139 = vmatpush1.msra.mxu0 0.0
    %140 = vmatprep.subr.mxu0 0.0
    %141 = vmatpush1.msra.mxu0 0.0
    %142 = vmatprep.subr.mxu0 0.0
    %143 = vmatpush1.msra.mxu0 0.0
    %144 = vmatprep.subr.mxu0 0.0
    %145 = vmatpush1.msra.mxu0 0.0
    %146 = vmatprep.subr.mxu0 0.0
    %147 = vmatpush1.msra.mxu0 0.0
    %148 = vmatprep.subr.mxu0 0.0
    %149 = vmatpush1.msra.mxu0 0.0
    %150 = vmatprep.subr.mxu0 0.0
    %151 = vmatpush1.msra.mxu0 0.0
    %152 = vmatprep.subr.mxu0 0.0
    %153 = vmatpush1.msra.mxu0 0.0
    %154 = vmatprep.subr.mxu0 0.0
    %155 = vmatpush1.msra.mxu0 0.0
    %156 = vmatprep.subr.mxu0 0.0
    %157 = vmatpush1.msra.mxu0 0.0
    %158 = vmatprep.subr.mxu0 0.0
    %159 = vmatpush1.msra.mxu0 0.0
    %160 = vmatprep.subr.mxu0 0.0
    %161 = vmatpush1.msra.mxu0 0.0
    %162 = vmatprep.subr.mxu0 0.0
    %163 = vmatpush1.msra.mxu0 0.0
    %164 = vmatprep.subr.mxu0 0.0
    %165 = vmatpush1.msra.mxu0 0.0
    %166 = vmatprep.subr.mxu0 0.0
    %167 = vmatpush1.msra.mxu0 0.0
    %168 = vmatprep.subr.mxu0 0.0
    %169 = vmatpush1.msra.mxu0 0.0
    %170 = vmatprep.subr.mxu0 0.0
    %171 = vmatpush1.msra.mxu0 0.0
    %172 = vmatprep.subr.mxu0 0.0
    %173 = vmatpush1.msra.mxu0 0.0
    %174 = vmatprep.mubr.f32.mxu0 0.0
    %175 = vmatmul.mubr.f32.gmra.mrb[0].mxu0 %v108
    %v176 = vpop.f32.mrb[0].mxu0
    %v177 = vadd.f32 %v26, %v176
    %v178 = vpop.f32.mrb[0].mxu0
    %179 = vdwg.mxu0
    %v180 = vadd.f32 %v103, %v177
    %182 = vrot.lane.b32.xlu0 %v177, 5
    %v183 = vpop.permute.xlu0 %182
    %186 = vrot.lane.b32.xlu0 %v180, 10
    %v187 = vpop.permute.xlu0 %186
    %vm189 = vcmask 39936
    %v190 = vsel %vm189, %v103, %v183
    %v191 = vsel %vm28, %v190, %v187
    %vm192 = vcmask 116736
    %193 = vst.msk [vmem:[#allocation2] sm:$0x7] %vm192, %v191
    // Predicated region
    $region18: #{tpu_custom_call.1} parent=1 // pred_check
      _
    $region19: #{tpu_custom_call.1} parent=1 // pred_check_branch
      %195 = sbr.rel (0) target = $region21
    $region20: #{tpu_custom_call.1} parent=1 // pred_region
      %s197 = ssub.s32 64, 64
      %198 = vsyncadd [#allocation3], %s197
      %s200 = sshll.u32 [#allocation2], 4
      %s201 = int_to_ptr.vmem [resolvable:$true] %s200
      %203 = dma.vmem_to_hbm [thread:$0]  %s201, 64, %s4, [#allocation3]
    $region21: #{tpu_custom_call.1} parent=1 // pred_fallthru
      _
    // Predicated region
    $region22: #{tpu_custom_call.1} parent=1 // pred_check
      _
    $region23: #{tpu_custom_call.1} parent=1 // pred_check_branch
      %205 = sbr.rel (0) target = $region25
    $region24: #{tpu_custom_call.1} parent=1 // pred_region
      %206 = dma.done [#allocation3], 64
    $region25: #{tpu_custom_call.1} parent=1 // pred_fallthru
      _
    %207 = vsyncpa [#allocation3], 1

</llo_original>
